<compile_context>
chip_gen: v7x
topology: tpu7x:2x2x1
jax: 0.10.0
libtpu: 0.0.40
codegen_flags: <defaults>
</compile_context>

<pallas_src>
import numpy as np
import jax
import jax.numpy as jnp
from jax import lax
from jax.experimental import pallas as pl
from jax.experimental.pallas import tpu as pltpu


def _round_up(x, m):
    return ((x + m - 1) // m) * m


def _cdiv(a, b):
    return -(-a // b)


# ---------------- Pallas kernels (hot path) ----------------

def _stats_kernel(b_ref, at_ref, stats_ref):
    """Per row-tile: y = B @ AT_tile on the MXU (bf16 in, f32 acc), then per-row
    sum and SHIFTED sum-of-squares (shift = this tile's own mean) -> per-tile
    partial stats.  No y is written to HBM."""
    y = jnp.dot(b_ref[...], at_ref[...], preferred_element_type=jnp.float32)  # (M, tn)
    inv_tn = 1.0 / y.shape[1]
    row_sum = jnp.sum(y, axis=1, keepdims=True)            # (M, 1)
    shift = row_sum * inv_tn                                # (M, 1)
    d = y - shift
    row_ssq = jnp.sum(d * d, axis=1, keepdims=True)         # (M, 1)
    stats_ref[0, 0] = row_sum
    stats_ref[0, 1] = row_ssq
    stats_ref[0, 2] = shift


def _apply_kernel(b_ref, at_ref, ss_ref, out_ref):
    """Per row-tile: recompute y = B @ AT_tile, apply precomputed per-row
    BatchNorm scale/shift + ReLU, write the lane-dense (M, tn) output tile."""
    y = jnp.dot(b_ref[...], at_ref[...], preferred_element_type=jnp.float32)  # (M, tn)
    out_ref[...] = jnp.maximum(y * ss_ref[0] + ss_ref[1], 0.0)


# ---------------- pallas_call wrappers ----------------

def conv_union_stats(B, AT, tn, n_tiles):
    """B: (M, Kp) bf16, AT: (Kp, r_pad) bf16 -> per-tile stats (n_tiles, 3, M, 1) f32."""
    M, Kp = B.shape
    return pl.pallas_call(
        _stats_kernel,
        out_shape=jax.ShapeDtypeStruct((n_tiles, 3, M, 1), jnp.float32),
        grid=(n_tiles,),
        in_specs=[
            pl.BlockSpec((M, Kp), lambda r: (0, 0)),
            pl.BlockSpec((Kp, tn), lambda r: (0, r)),
        ],
        out_specs=pl.BlockSpec((1, 3, M, 1), lambda r: (r, 0, 0, 0)),
        compiler_params=pltpu.CompilerParams(
            dimension_semantics=("parallel",),
            vmem_limit_bytes=32 * 1024 * 1024),
    )(B, AT)


def conv_union_bn_relu(B, AT, scale_shift, tn):
    """B: (M, Kp) bf16, AT: (Kp, r_pad) bf16, scale_shift: (2, M, 1) f32
    -> phase-major output (M, r_pad) f32 (conv recomputed, BN+ReLU fused)."""
    M, Kp = B.shape
    _, r_pad = AT.shape
    return pl.pallas_call(
        _apply_kernel,
        out_shape=jax.ShapeDtypeStruct((M, r_pad), jnp.float32),
        grid=(r_pad // tn,),
        in_specs=[
            pl.BlockSpec((M, Kp), lambda r: (0, 0)),
            pl.BlockSpec((Kp, tn), lambda r: (0, r)),
            pl.BlockSpec((2, M, 1), lambda r: (0, 0, 0)),
        ],
        out_specs=pl.BlockSpec((M, tn), lambda r: (0, r)),
        compiler_params=pltpu.CompilerParams(
            dimension_semantics=("parallel",),
            vmem_limit_bytes=32 * 1024 * 1024),
    )(B, AT, scale_shift)


# ---------------- operand prep (bf16, union of the 4 phases) ----------------

def _phase_taps(stride, padding, K):
    """For each output parity d: list of (kernel tap k, input offset e = ih - p)."""
    taps = []
    for d in range(stride):
        taps.append([(k, (d + padding - k) // stride) for k in range(K)
                     if (k - d - padding) % stride == 0])
    return taps


def _union_im2col_bf16(x_bf16, stride, padding, K):
    """Gathered input for ALL phases at once: AT (Cin*9, N*Ph*Pw) bf16.
    K-axis order: (ci, eh+1, ew+1) with e in {-1,0,1}."""
    N, Cin, H, W = x_bf16.shape
    s = stride
    H_out = (H - 1) * s - 2 * padding + K
    W_out = (W - 1) * s - 2 * padding + K
    Ph, Pw = H_out // s, W_out // s
    xp = jnp.pad(x_bf16, ((0, 0), (0, 0), (1, 1), (1, 1)))
    cols = [xp[:, :, eh:eh + Ph, ew:ew + Pw] for eh in range(3) for ew in range(3)]
    a = jnp.stack(cols, axis=2)                              # (N, Cin, 9, Ph, Pw)
    AT = a.transpose(1, 2, 0, 3, 4).reshape(Cin * 9, N * Ph * Pw)
    return AT, (H_out, W_out, Ph, Pw)


def _build_union_weight(w, stride, padding):
    """Phase-major union weight B (s*s*Cout, Cin*9): row (dh*s+dw)*Cout+co,
    column ci*9 + (eh+1)*3 + (ew+1); taps unused by a phase stay zero."""
    Cin, Cout, K, _ = w.shape
    s = stride
    taps = _phase_taps(s, padding, K)
    assert all(-1 <= e <= 1 for tl in taps for (_, e) in tl), \
        "union im2col written for the Decoder defaults (K=4, stride=2, pad=1)"
    B = jnp.zeros((s * s, Cout, Cin, 3, 3), w.dtype)
    for dh in range(s):
        for dw in range(s):
            ph = dh * s + dw
            for (kh, eh) in taps[dh]:
                for (kw, ew) in taps[dw]:
                    B = B.at[ph, :, :, eh + 1, ew + 1].set(
                        jnp.transpose(w[:, :, kh, kw]))       # (Cout, Cin)
    return B.reshape(s * s * Cout, Cin * 9)


# ---------------- Decoder forward (prep + kernels + tiny finalize) ----------------

def decoder_forward(x, w, gamma, beta, stride=2, padding=1, eps=1e-5):
    N, Cin, H, W = x.shape
    _, Cout, K, _ = w.shape
    s = stride
    assert (K, s, padding) == (4, 2, 1), \
        "kernel written for the Decoder module defaults (filter_size=4, stride=2, padding=1)"

    # bf16 operand prep (gather done directly in bf16; halves the prep stream)
    AT, (H_out, W_out, Ph, Pw) = _union_im2col_bf16(x.astype(jnp.bfloat16), s, padding, K)
    B = _build_union_weight(w, s, padding).astype(jnp.bfloat16)   # (4*Cout, Cin*9)
    M, Kp = B.shape
    rows = AT.shape[1]                                            # N * Ph * Pw

    # Row tiling: large lane-dense tiles; zero-pad rows (fused in bf16 prep).
    CAP = 16384
    tn = min(CAP, max(128, _round_up(_cdiv(rows, 2), 128)))       # >=2 tiles when possible
    n_tiles = _cdiv(rows, tn)
    r_pad = n_tiles * tn
    if r_pad != rows:
        AT = jnp.pad(AT, ((0, 0), (0, r_pad - rows)))

    # Pass 1: per-tile partial BatchNorm stats (no y materialized in HBM).
    stats = conv_union_stats(B, AT, tn, n_tiles)                  # (T, 3, M, 1) f32

    # Tiny JAX finalize: Chan et al. combine across tiles & phases, pad-corrected.
    sums = stats[:, 0, :, 0]                                      # (T, M)
    ssqs = stats[:, 1, :, 0]                                      # (T, M) shifted ssq
    shfs = stats[:, 2, :, 0]                                      # (T, M) per-tile shift
    n_valid = jnp.clip(rows - jnp.arange(n_tiles) * tn, 0, tn).astype(jnp.float32)  # (T,)
    n_pad = tn - n_valid
    # padded columns are exact zeros -> each contributed shift^2 to the shifted ssq
    ssq_v = ssqs - n_pad[:, None] * shfs * shfs
    m_g = sums / n_valid[:, None]                                 # per-tile per-row mean
    m2_g = jnp.maximum(ssq_v - n_valid[:, None] * (m_g - shfs) ** 2, 0.0)

    count = float(s * s * rows)                                   # = N * H_out * W_out
    sum_c = sums.reshape(n_tiles, s * s, Cout).sum(axis=(0, 1))   # (Cout,)
    mean_c = sum_c / count
    m_gr = m_g.reshape(n_tiles, s * s, Cout)
    m2_c = (m2_g.reshape(n_tiles, s * s, Cout)
            + n_valid[:, None, None] * (m_gr - mean_c) ** 2).sum(axis=(0, 1))
    var_c = m2_c / count                                          # biased var (BN training)
    inv_std = lax.rsqrt(var_c + eps)
    scale_c = gamma.astype(jnp.float32) * inv_std
    shift_c = beta.astype(jnp.float32) - mean_c * scale_c
    scale_shift = jnp.stack([jnp.tile(scale_c, s * s),
                             jnp.tile(shift_c, s * s)], axis=0).reshape(2, M, 1)

    # Pass 2: recompute conv matmul, fused BN apply + ReLU, phase-major output.
    ypm = conv_union_bn_relu(B, AT, scale_shift, tn)              # (M, r_pad) f32

    # Phase-major -> NCHW interleave.
    # TODO(synk): the stride-2 NCHW scatter (out[:, :, dh::2, dw::2]) is not
    # expressible as a rectangular BlockSpec; done as one XLA transpose (a consumer
    # accepting phase-major / NHWC output could skip it entirely).
    out = ypm[:, :rows].reshape(s, s, Cout, N, Ph, Pw)            # (dh, dw, co, n, p, q)
    out = out.transpose(3, 2, 4, 0, 5, 1).reshape(N, Cout, H_out, W_out)
    return out


# ---------------- numpy reference (PyTorch semantics) ----------------

def reference(x, w, gamma, beta, stride=2, padding=1, eps=1e-5):
    x = np.asarray(x, np.float64)
    w = np.asarray(w, np.float64)
    gamma = np.asarray(gamma, np.float64)
    beta = np.asarray(beta, np.float64)
    N, Cin, H, W = x.shape
    _, Cout, K, _ = w.shape
    H_out = (H - 1) * stride - 2 * padding + K
    W_out = (W - 1) * stride - 2 * padding + K
    Hf, Wf = (H - 1) * stride + K, (W - 1) * stride + K
    yfull = np.zeros((N, Cout, Hf, Wf))
    t = np.einsum('nihw,iokl->nohwkl', x, w)
    for kh in range(K):
        for kw in range(K):
            yfull[:, :, kh:kh + (H - 1) * stride + 1:stride,
                        kw:kw + (W - 1) * stride + 1:stride] += t[..., kh, kw]
    y = yfull[:, :, padding:padding + H_out, padding:padding + W_out]
    mean = y.mean(axis=(0, 2, 3), keepdims=True)
    var = y.var(axis=(0, 2, 3), keepdims=True)
    yn = (y - mean) / np.sqrt(var + eps) * gamma.reshape(1, -1, 1, 1) + beta.reshape(1, -1, 1, 1)
    return np.maximum(yn, 0.0)


if __name__ == "__main__":
    key = jax.random.PRNGKey(0)
    k1, k2 = jax.random.split(key)

    depth_in, n_filters, K = 4, 8, 4
    N, H, W = 2, 16, 16                      # -> output (2, 8, 32, 32)

    x = jax.random.normal(k1, (N, depth_in, H, W), jnp.float32)
    # ConvTranspose2d weight shape: (in_channels, out_channels, kH, kW)
    w = jax.random.normal(k2, (depth_in, n_filters, K, K), jnp.float32) * 0.1
    gamma = jnp.ones((n_filters,), jnp.float32)   # BatchNorm2d default init
    beta = jnp.zeros((n_filters,), jnp.float32)

    fwd = jax.jit(decoder_forward)
    out = jax.block_until_ready(fwd(x, w, gamma, beta))

    ref = reference(x, w, gamma, beta)
    # bf16 MXU inputs (f32 accumulation / f32 BN stats) -> slightly looser tolerance
    np.testing.assert_allclose(np.asarray(out), ref, rtol=3e-2, atol=3e-2)
    print("KERNEL_OK")
</pallas_src>

<mosaic_0001>
module attributes {stable_mosaic.version = 11 : i64} {
  func.func @_stats_kernel(%arg0: i32, %arg1: memref<32x36xbf16, #tpu.memory_space<vmem>>, %arg2: memref<36x256xbf16, #tpu.memory_space<vmem>>, %arg3: memref<1x3x32x1xf32, #tpu.memory_space<vmem>>) attributes {dimension_semantics = [#tpu.dimension_semantics<parallel>], iteration_bounds = array<i64: 2>, scalar_prefetch = 0 : i64, scratch_operands = 0 : i64, tpu.core_type = #tpu.core_type<tc>, window_params = [{pipeline_mode = #tpu.pipeline_mode<synchronous>, transform_indices = @transform_0, window_bounds = array<i64: 32, 36>}, {transform_indices = @transform_1, window_bounds = array<i64: 36, 256>}, {transform_indices = @transform_2, window_bounds = array<i64: 1, 3, 32, 1>}]} {
    %c0 = arith.constant 0 : index
    %c0_0 = arith.constant 0 : index
    %0 = vector.load %arg1[%c0, %c0_0] : memref<32x36xbf16, #tpu.memory_space<vmem>>, vector<32x36xbf16>
    %c0_1 = arith.constant 0 : index
    %c0_2 = arith.constant 0 : index
    %1 = vector.load %arg2[%c0_1, %c0_2] : memref<36x256xbf16, #tpu.memory_space<vmem>>, vector<36x256xbf16>
    %cst = arith.constant dense<0.000000e+00> : vector<32x256xf32>
    %2 = tpu.matmul %0, %1, %cst {dimension_numbers = #tpu.dot_dimension_numbers<[1], [0], [0], [1], [0, 0, 1, 1], [], []>} : vector<32x36xbf16>, vector<36x256xbf16>, vector<32x256xf32> -> vector<32x256xf32>
    %cst_3 = arith.constant dense<0.000000e+00> : vector<32xf32>
    %3 = vector.multi_reduction <add>, %2, %cst_3 [1] : vector<32x256xf32> to vector<32xf32>
    %4 = vector.shape_cast %3 : vector<32xf32> to vector<32x1xf32>
    %cst_4 = arith.constant 3.906250e-03 : f32
    %5 = vector.broadcast %cst_4 : f32 to vector<32x1xf32>
    %6 = arith.mulf %4, %5 : vector<32x1xf32>
    %7 = vector.broadcast %6 : vector<32x1xf32> to vector<32x256xf32>
    %8 = arith.subf %2, %7 : vector<32x256xf32>
    %9 = arith.mulf %8, %8 : vector<32x256xf32>
    %cst_5 = arith.constant dense<0.000000e+00> : vector<32xf32>
    %10 = vector.multi_reduction <add>, %9, %cst_5 [1] : vector<32x256xf32> to vector<32xf32>
    %11 = vector.shape_cast %10 : vector<32xf32> to vector<32x1xf32>
    %c0_6 = arith.constant 0 : index
    %c0_7 = arith.constant 0 : index
    %c0_8 = arith.constant 0 : index
    %c0_9 = arith.constant 0 : index
    %12 = vector.load %arg3[%c0_6, %c0_7, %c0_8, %c0_9] : memref<1x3x32x1xf32, #tpu.memory_space<vmem>>, vector<1x1x32x1xf32>
    %13 = vector.shape_cast %12 : vector<1x1x32x1xf32> to vector<32x1xf32>
    %14 = vector.shape_cast %4 : vector<32x1xf32> to vector<1x1x32x1xf32>
    tpu.vector_store %arg3[%c0_6, %c0_7, %c0_8, %c0_9], %14 {strides = array<i32>} : memref<1x3x32x1xf32, #tpu.memory_space<vmem>>, vector<1x1x32x1xf32>,
    %c0_10 = arith.constant 0 : index
    %c1 = arith.constant 1 : index
    %c0_11 = arith.constant 0 : index
    %c0_12 = arith.constant 0 : index
    %15 = vector.load %arg3[%c0_10, %c1, %c0_11, %c0_12] : memref<1x3x32x1xf32, #tpu.memory_space<vmem>>, vector<1x1x32x1xf32>
    %16 = vector.shape_cast %15 : vector<1x1x32x1xf32> to vector<32x1xf32>
    %17 = vector.shape_cast %11 : vector<32x1xf32> to vector<1x1x32x1xf32>
    tpu.vector_store %arg3[%c0_10, %c1, %c0_11, %c0_12], %17 {strides = array<i32>} : memref<1x3x32x1xf32, #tpu.memory_space<vmem>>, vector<1x1x32x1xf32>,
    %c0_13 = arith.constant 0 : index
    %c2 = arith.constant 2 : index
    %c0_14 = arith.constant 0 : index
    %c0_15 = arith.constant 0 : index
    %18 = vector.load %arg3[%c0_13, %c2, %c0_14, %c0_15] : memref<1x3x32x1xf32, #tpu.memory_space<vmem>>, vector<1x1x32x1xf32>
    %19 = vector.shape_cast %18 : vector<1x1x32x1xf32> to vector<32x1xf32>
    %20 = vector.shape_cast %6 : vector<32x1xf32> to vector<1x1x32x1xf32>
    tpu.vector_store %arg3[%c0_13, %c2, %c0_14, %c0_15], %20 {strides = array<i32>} : memref<1x3x32x1xf32, #tpu.memory_space<vmem>>, vector<1x1x32x1xf32>,
    return
  }
  func.func @transform_0(%arg0: i32) -> (i32, i32) {
    %c0_i32 = arith.constant 0 : i32
    %c0_i32_0 = arith.constant 0 : i32
    %c0_i32_1 = arith.constant 0 : i32
    return %c0_i32, %c0_i32_0 : i32, i32
  }
  func.func @transform_1(%arg0: i32) -> (i32, i32) {
    %c0_i32 = arith.constant 0 : i32
    %c0_i32_0 = arith.constant 0 : i32
    return %c0_i32, %arg0 : i32, i32
  }
  func.func @transform_2(%arg0: i32) -> (i32, i32, i32, i32) {
    %c0_i32 = arith.constant 0 : i32
    %c0_i32_0 = arith.constant 0 : i32
    %c0_i32_1 = arith.constant 0 : i32
    %c0_i32_2 = arith.constant 0 : i32
    return %arg0, %c0_i32, %c0_i32_0, %c0_i32_1 : i32, i32, i32, i32
  }
}

module attributes {stable_mosaic.version = 11 : i64} {
  func.func @_apply_kernel(%arg0: i32, %arg1: memref<32x36xbf16, #tpu.memory_space<vmem>>, %arg2: memref<36x256xbf16, #tpu.memory_space<vmem>>, %arg3: memref<2x32x1xf32, #tpu.memory_space<vmem>>, %arg4: memref<32x256xf32, #tpu.memory_space<vmem>>) attributes {dimension_semantics = [#tpu.dimension_semantics<parallel>], iteration_bounds = array<i64: 2>, scalar_prefetch = 0 : i64, scratch_operands = 0 : i64, tpu.core_type = #tpu.core_type<tc>, window_params = [{pipeline_mode = #tpu.pipeline_mode<synchronous>, transform_indices = @transform_0, window_bounds = array<i64: 32, 36>}, {transform_indices = @transform_1, window_bounds = array<i64: 36, 256>}, {pipeline_mode = #tpu.pipeline_mode<synchronous>, transform_indices = @transform_2, window_bounds = array<i64: 2, 32, 1>}, {transform_indices = @transform_3, window_bounds = array<i64: 32, 256>}]} {
    %c0 = arith.constant 0 : index
    %c0_0 = arith.constant 0 : index
    %0 = vector.load %arg1[%c0, %c0_0] : memref<32x36xbf16, #tpu.memory_space<vmem>>, vector<32x36xbf16>
    %c0_1 = arith.constant 0 : index
    %c0_2 = arith.constant 0 : index
    %1 = vector.load %arg2[%c0_1, %c0_2] : memref<36x256xbf16, #tpu.memory_space<vmem>>, vector<36x256xbf16>
    %cst = arith.constant dense<0.000000e+00> : vector<32x256xf32>
    %2 = tpu.matmul %0, %1, %cst {dimension_numbers = #tpu.dot_dimension_numbers<[1], [0], [0], [1], [0, 0, 1, 1], [], []>} : vector<32x36xbf16>, vector<36x256xbf16>, vector<32x256xf32> -> vector<32x256xf32>
    %c0_3 = arith.constant 0 : index
    %c0_4 = arith.constant 0 : index
    %c0_5 = arith.constant 0 : index
    %3 = vector.load %arg3[%c0_3, %c0_4, %c0_5] : memref<2x32x1xf32, #tpu.memory_space<vmem>>, vector<1x32x1xf32>
    %4 = vector.shape_cast %3 : vector<1x32x1xf32> to vector<32x1xf32>
    %5 = vector.broadcast %4 : vector<32x1xf32> to vector<32x256xf32>
    %6 = arith.mulf %2, %5 : vector<32x256xf32>
    %c1 = arith.constant 1 : index
    %c0_6 = arith.constant 0 : index
    %c0_7 = arith.constant 0 : index
    %7 = vector.load %arg3[%c1, %c0_6, %c0_7] : memref<2x32x1xf32, #tpu.memory_space<vmem>>, vector<1x32x1xf32>
    %8 = vector.shape_cast %7 : vector<1x32x1xf32> to vector<32x1xf32>
    %9 = vector.broadcast %8 : vector<32x1xf32> to vector<32x256xf32>
    %10 = arith.addf %6, %9 : vector<32x256xf32>
    %cst_8 = arith.constant 0.000000e+00 : f32
    %11 = vector.broadcast %cst_8 : f32 to vector<32x256xf32>
    %12 = arith.maximumf %10, %11 : vector<32x256xf32>
    %c0_9 = arith.constant 0 : index
    %c0_10 = arith.constant 0 : index
    %13 = vector.load %arg4[%c0_9, %c0_10] : memref<32x256xf32, #tpu.memory_space<vmem>>, vector<32x256xf32>
    tpu.vector_store %arg4[%c0_9, %c0_10], %12 {strides = array<i32>} : memref<32x256xf32, #tpu.memory_space<vmem>>, vector<32x256xf32>,
    return
  }
  func.func @transform_0(%arg0: i32) -> (i32, i32) {
    %c0_i32 = arith.constant 0 : i32
    %c0_i32_0 = arith.constant 0 : i32
    %c0_i32_1 = arith.constant 0 : i32
    return %c0_i32, %c0_i32_0 : i32, i32
  }
  func.func @transform_1(%arg0: i32) -> (i32, i32) {
    %c0_i32 = arith.constant 0 : i32
    %c0_i32_0 = arith.constant 0 : i32
    return %c0_i32, %arg0 : i32, i32
  }
  func.func @transform_2(%arg0: i32) -> (i32, i32, i32) {
    %c0_i32 = arith.constant 0 : i32
    %c0_i32_0 = arith.constant 0 : i32
    %c0_i32_1 = arith.constant 0 : i32
    %c0_i32_2 = arith.constant 0 : i32
    return %c0_i32, %c0_i32_0, %c0_i32_1 : i32, i32, i32
  }
  func.func @transform_3(%arg0: i32) -> (i32, i32) {
    %c0_i32 = arith.constant 0 : i32
    %c0_i32_0 = arith.constant 0 : i32
    return %c0_i32, %arg0 : i32, i32
  }
}

</mosaic_0001>

<llo_original>
// kernel: tile.19
$region0: #{tile.19}
  %s0 = inlined_call_operand.vmem [shape: f32[4,8], index: 0, kind: input, shape index: {}]
  %s1 = inlined_call_operand.vmem [shape: f32[1,32], index: 1, kind: output, shape index: {}]
  $region1: #{tile.19} parent=0
    #allocation0 [shape = 'u8[4096]{0}', space=vmem, size = 0x1000, scoped, tag = 'scoped mem for output reshape']
    #allocation1 [shape = 'u8[4096]{0}', space=vmem, size = 0x1000, scoped, tag = 'scoped mem for input reshape']
    %s3 = sshllo.u32 0, 4
    %v4 = vld [vmem:[%s0] sm:%s3]
    %5 = vst [vmem:[#allocation1] sm:%s3] %v4
    %v6 = vld [vmem:[#allocation1] sm:$0x1]
    %vm7 = vcmask 64512
    %8 = vst.msk [vmem:[#allocation0] sm:$0x1] %vm7, %v6
    %s9 = scalar_lea.vmem [#allocation1], 3
    %v10 = vld [vmem:[%s9] sm:$0x1]
    %11 = vrot.lane.b32.xlu0 %v10, 24
    %v12 = vpop.permute.xlu0 %11
    %vm13 = vcmask 261312
    %14 = vst.msk [vmem:[#allocation0] sm:$0x1] %vm13, %v12
    %s15 = scalar_lea.vmem [#allocation1], 2
    %v16 = vld [vmem:[%s15] sm:$0x1]
    %17 = vrot.lane.b32.xlu0 %v16, 16
    %v18 = vpop.permute.xlu0 %17
    %vm19 = vcmask 195712
    %20 = vst.msk [vmem:[#allocation0] sm:$0x1] %vm19, %v18
    %s21 = scalar_lea.vmem [#allocation1], 1
    %v22 = vld [vmem:[%s21] sm:$0x1]
    %23 = vrot.lane.b32.xlu0 %v22, 8
    %v24 = vpop.permute.xlu0 %23
    %vm25 = vcmask 130112
    %26 = vst.msk [vmem:[#allocation0] sm:$0x1] %vm25, %v24
    %s28 = sshllo.u32 0, 1
    %v30 = vld [vmem:[#allocation0] sm:%s28]
    %s31 = sshllo.u32 0, 1
    %32 = vst [vmem:[%s1] sm:%s31] %v30

// kernel: decoder_forward.2
$region0: #{decoder_forward.2}
  #allocation0 [shape = 'u32[]', space=smem, size = 0x4, offset = 0x4, fixed_abs, tag = 'smem constant byte address 0x4 - core index']
  #allocation1 [shape = 'u32[144,128]{1,0:T(1,128)}', space=vmem, size = 0x12000, scoped, tag = 'internal scratch']
  %s0 = inlined_call_operand.vmem [shape: bf16[32,36], index: 0, kind: input, shape index: {}]
  %s1 = inlined_call_operand.vmem [shape: bf16[36,512], index: 1, kind: input, shape index: {}]
  %s2 = inlined_call_operand.vmem [shape: f32[2,3,32,1], index: 2, kind: output, shape index: {}]
  %s3 = sld [smem:[#allocation0]]
  $region79: #{decoder_forward.2} parent=0
    _
  %s5 = ssub.s32 1, %s3
  %s6 = scalar_select 0, %s5, %s3
  $region1: #{decoder_forward.2} parent=0
    #allocation2 [shape = 'u8[40960]{0}', space=vmem, size = 0xa000, scoped, tag = 'input window, operand 1']
    loop: start=0, step=1, limit=4
    $region2: #{decoder_forward.2} parent=1 // loop_pre_header
      _
    $region3: #{decoder_forward.2} parent=1 // loop_header
      %s8 = sphi 0, %s12
      %p9 = scmp.ge.s32.totalorder %s8, 4
      %s16 = sphi 0, %s16
      %s18 = sphi 0, %s16
      %s19 = sphi 0, %s18
      %s33 = sphi 0, %s19
      %s39 = sphi 0, %s41
      %s42 = sphi 0, %s39
      %s43 = sphi 0, %s42
      %s59 = sphi 0, %s43
      %s65 = sphi 0, %s67
      %s68 = sphi 0, %s65
      %s69 = sphi 0, %s68
      %s85 = sphi 0, %s69
    $region4: #{decoder_forward.2} parent=1 // loop_header_branch
      %11 = sbr.rel (%p9) target = $region8
    $region5: #{decoder_forward.2} parent=1 // loop_body
      %s13 = ssub.s32 %s8, 1
      %s14 = ssub.s32 %s8, 2
      %s15 = sadd.s32 %s8, 1
      %s17 = sadd.s32 %s16, 1
      %p20 = scmp.eq.s32.totalorder %s8, 1
      %p21 = scmp.ne.s32.totalorder %s16, %s18
      %p22 = scmp.eq.s32.totalorder %s8, 0
      %p23 = por %p21, %p22
      %p24 = scmp.ne.s32.totalorder %s16, %s18
      %p25 = scmp.eq.s32.totalorder %s13, 1
      %p26 = por %p24, %p25
      %p27 = scmp.ne.s32.totalorder %s18, %s19
      %p28 = scmp.eq.s32.totalorder %s13, 0
      %p29 = por %p27, %p28
      %p30 = scmp.ne.s32.totalorder %s18, %s19
      %p31 = scmp.eq.s32.totalorder %s14, 1
      %p32 = por %p30, %p31
      %p34 = scmp.ne.s32.totalorder %s19, %s33
      %p35 = scmp.eq.s32.totalorder %s14, 0
      %p36 = por %p34, %p35
      %s37 = ssub.s32 %s8, %s15
      %p38 = scmp.eq.s32.totalorder %s37, 0
      %s40 = sadd.s32 %s39, 1
      %s41 = scalar_select %p38, %s39, %s40
      %p44 = pneg %p38
      %p45 = scmp.eq.s32.totalorder %s8, 1
      %p46 = por %p44, %p45
      %p47 = scmp.ne.s32.totalorder %s39, %s42
      %p48 = scmp.eq.s32.totalorder %s8, 0
      %p49 = por %p47, %p48
      %p50 = scmp.ne.s32.totalorder %s39, %s42
      %p51 = scmp.eq.s32.totalorder %s13, 1
      %p52 = por %p50, %p51
      %p53 = scmp.ne.s32.totalorder %s42, %s43
      %p54 = scmp.eq.s32.totalorder %s13, 0
      %p55 = por %p53, %p54
      %p56 = scmp.ne.s32.totalorder %s42, %s43
      %p57 = scmp.eq.s32.totalorder %s14, 1
      %p58 = por %p56, %p57
      %p60 = scmp.ne.s32.totalorder %s43, %s59
      %p61 = scmp.eq.s32.totalorder %s14, 0
      %p62 = por %p60, %p61
      %s63 = ssub.s32 %s8, %s15
      %p64 = scmp.eq.s32.totalorder %s63, 0
      %s66 = sadd.s32 %s65, 1
      %s67 = scalar_select %p64, %s65, %s66
      %p70 = pneg %p64
      %p71 = scmp.eq.s32.totalorder %s8, 1
      %p72 = por %p70, %p71
      %p73 = scmp.ne.s32.totalorder %s65, %s68
      %p74 = scmp.eq.s32.totalorder %s8, 0
      %p75 = por %p73, %p74
      %p76 = scmp.ne.s32.totalorder %s65, %s68
      %p77 = scmp.eq.s32.totalorder %s13, 1
      %p78 = por %p76, %p77
      %p79 = scmp.ne.s32.totalorder %s68, %s69
      %p80 = scmp.eq.s32.totalorder %s13, 0
      %p81 = por %p79, %p80
      %p82 = scmp.ne.s32.totalorder %s68, %s69
      %p83 = scmp.eq.s32.totalorder %s14, 1
      %p84 = por %p82, %p83
      %p86 = scmp.ne.s32.totalorder %s69, %s85
      %p87 = scmp.eq.s32.totalorder %s14, 0
      %p88 = por %p86, %p87
      %p89 = scmp.le.s32.totalorder 1, %s8
      %p90 = scmp.lt.s32.totalorder %s8, 3
      %p91 = pnand %p89, %p90
      %p92 = pneg %p91
      // Predicated region
      $region9: #{decoder_forward.2} parent=5 // pred_check
        _
      $region10: #{decoder_forward.2} parent=5 // pred_check_branch
        %94 = sbr.rel (%p91) target = $region12
      $region11: #{decoder_forward.2} parent=5 // pred_region
        %s95 = ssub.s32 %s8, 1
        // Predicated region
        $region13: #{decoder_forward.2} parent=11 // pred_check
          %p96 = pneg %p29
        $region14: #{decoder_forward.2} parent=11 // pred_check_branch
          %98 = sbr.rel (%p96) target = $region16
        $region15: #{decoder_forward.2} parent=11 // pred_region
          _
        $region16: #{decoder_forward.2} parent=11 // pred_fallthru
          _
      $region12: #{decoder_forward.2} parent=5 // pred_fallthru
        _
      %p99 = scmp.lt.s32.totalorder %s8, 2
      // Predicated region
      $region17: #{decoder_forward.2} parent=5 // pred_check
        %p100 = pneg %p99
      $region18: #{decoder_forward.2} parent=5 // pred_check_branch
        %102 = sbr.rel (%p100) target = $region20
      $region19: #{decoder_forward.2} parent=5 // pred_region
        // Predicated region
        $region21: #{decoder_forward.2} parent=19 // pred_check
          %p103 = pneg %p49
        $region22: #{decoder_forward.2} parent=19 // pred_check_branch
          %105 = sbr.rel (%p103) target = $region24
        $region23: #{decoder_forward.2} parent=19 // pred_region
          %s106 = sand.u32 %s39, 1
          %s107 = sand.u32 %s39, 1
          %s108 = smul.addr %s107, 40
          %s109 = scalar_lea.vmem [#allocation2], %s108
          %s110 = smul.u32 2, %s8
          %s111 = smul.addr %s110, 4
          %s112 = scalar_lea.vmem %s1, %s111
          // Predicated region
          $region25: #{decoder_forward.2} parent=23 // pred_check
            _
          $region26: #{decoder_forward.2} parent=23 // pred_check_branch
            %114 = sbr.rel (0) target = $region28
          $region27: #{decoder_forward.2} parent=23 // pred_region
            // Predicated region
            $region29: #{decoder_forward.2} parent=27 // pred_check
              _
            $region30: #{decoder_forward.2} parent=27 // pred_check_branch
              %116 = sbr.rel (0) target = $region32
            $region31: #{decoder_forward.2} parent=27 // pred_region
              // Predicated region
              $region44: #{decoder_forward.2} parent=31 // pred_check
                _
              $region45: #{decoder_forward.2} parent=31 // pred_check_branch
                %139 = sbr.rel (0) target = $region47
              $region46: #{decoder_forward.2} parent=31 // pred_region
                loop: start=0, step=1, limit=1
                $region48: #{decoder_forward.2} parent=46 // loop_pre_header
                  _
                $region49: #{decoder_forward.2} parent=46 // loop_header
                  %s141 = sphi 0, %s145
                  %p142 = scmp.ge.s32.totalorder %s141, 1
                  %s146 = sphi %s112, %s112
                  %s147 = sphi %s109, %s109
                $region50: #{decoder_forward.2} parent=46 // loop_header_branch
                  %144 = sbr.rel (%p142) target = $region54
                $region51: #{decoder_forward.2} parent=46 // loop_body
                  %v148 = vld [vmem:[%s146] sm:$0xff]
                  %149 = vst [vmem:[%s147] sm:$0xff] %v148
                  %v150 = vld [vmem:[%s146 + $0x10] sm:$0xff]
                  %151 = vst [vmem:[%s147 + $0x8] sm:$0xff] %v150
                  %v152 = vld [vmem:[%s146 + $0x20] sm:$0xff]
                  %153 = vst [vmem:[%s147 + $0x10] sm:$0xff] %v152
                  %v154 = vld [vmem:[%s146 + $0x30] sm:$0xff]
                  %155 = vst [vmem:[%s147 + $0x18] sm:$0xff] %v154
                  %v156 = vld [vmem:[%s146 + $0x40] sm:$0xff]
                  %157 = vst [vmem:[%s147 + $0x20] sm:$0xff] %v156
                $region52: #{decoder_forward.2} parent=46 // loop_footer
                  %s145 = sadd.s32 1, %s141
                $region53: #{decoder_forward.2} parent=46 // loop_footer_branch
                  %140 = sbr.rel target = $region49
                $region54: #{decoder_forward.2} parent=46 // loop_exit
                  _
              $region47: #{decoder_forward.2} parent=31 // pred_fallthru
                _
              // Predicated region
              $region55: #{decoder_forward.2} parent=31 // pred_check
                _
              $region56: #{decoder_forward.2} parent=31 // pred_check_branch
                %159 = sbr.rel target = $region58
              $region57: #{decoder_forward.2} parent=31 // pred_region
                _
              $region58: #{decoder_forward.2} parent=31 // pred_fallthru
                _
            $region32: #{decoder_forward.2} parent=27 // pred_fallthru
              _
            // Predicated region
            $region33: #{decoder_forward.2} parent=27 // pred_check
              _
            $region34: #{decoder_forward.2} parent=27 // pred_check_branch
              %118 = sbr.rel target = $region36
            $region35: #{decoder_forward.2} parent=27 // pred_region
              loop: start=0, step=1, limit=1
              $region37: #{decoder_forward.2} parent=35 // loop_pre_header
                _
              $region38: #{decoder_forward.2} parent=35 // loop_header
                %s121 = sphi 0, %s125
                %p122 = scmp.ge.s32.totalorder %s121, 1
                %s126 = sphi %s112, %s112
                %s127 = sphi %s109, %s109
              $region39: #{decoder_forward.2} parent=35 // loop_header_branch
                %124 = sbr.rel (%p122) target = $region43
              $region40: #{decoder_forward.2} parent=35 // loop_body
                %v128 = vld [vmem:[%s126] sm:$0xff]
                %129 = vst [vmem:[%s127] sm:$0xff] %v128
                %v130 = vld [vmem:[%s126 + $0x10] sm:$0xff]
                %131 = vst [vmem:[%s127 + $0x8] sm:$0xff] %v130
                %v132 = vld [vmem:[%s126 + $0x20] sm:$0xff]
                %133 = vst [vmem:[%s127 + $0x10] sm:$0xff] %v132
                %v134 = vld [vmem:[%s126 + $0x30] sm:$0xff]
                %135 = vst [vmem:[%s127 + $0x18] sm:$0xff] %v134
                %v136 = vld [vmem:[%s126 + $0x40] sm:$0xff]
                %137 = vst [vmem:[%s127 + $0x20] sm:$0xff] %v136
              $region41: #{decoder_forward.2} parent=35 // loop_footer
                %s125 = sadd.s32 1, %s121
              $region42: #{decoder_forward.2} parent=35 // loop_footer_branch
                %120 = sbr.rel target = $region38
              $region43: #{decoder_forward.2} parent=35 // loop_exit
                _
            $region36: #{decoder_forward.2} parent=27 // pred_fallthru
              _
          $region28: #{decoder_forward.2} parent=23 // pred_fallthru
            _
          %160 = vnop
        $region24: #{decoder_forward.2} parent=19 // pred_fallthru
          _
      $region20: #{decoder_forward.2} parent=5 // pred_fallthru
        _
      %p161 = scmp.le.s32.totalorder 1, %s8
      %p162 = scmp.lt.s32.totalorder %s8, 3
      %p163 = pnand %p161, %p162
      %p164 = pneg %p163
      // Predicated region
      $region59: #{decoder_forward.2} parent=5 // pred_check
        _
      $region60: #{decoder_forward.2} parent=5 // pred_check_branch
        %166 = sbr.rel (%p163) target = $region62
      $region61: #{decoder_forward.2} parent=5 // pred_region
        %s167 = ssub.s32 %s8, 1
        %s168 = sand.u32 %s42, 1
        %s169 = sand.u32 %s42, 1
        %s170 = smul.addr %s169, 40
        %s171 = scalar_lea.vmem [#allocation2], %s170
        // Predicated region
        $region63: #{decoder_forward.2} parent=61 // pred_check
          %p172 = pneg %p55
        $region64: #{decoder_forward.2} parent=61 // pred_check_branch
          %174 = sbr.rel (%p172) target = $region66
        $region65: #{decoder_forward.2} parent=61 // pred_region
          _
        $region66: #{decoder_forward.2} parent=61 // pred_fallthru
          _
        %p175 = pneg %p29
        %p176 = pneg %p26
        %s177 = sand.u32 %s42, 1
        %s178 = sand.u32 %s42, 1
        %s179 = smul.addr %s178, 40
        %s180 = scalar_lea.vmem [#allocation2], %s179
        %p181 = pneg %p55
        %p182 = pneg %p52
        %p183 = pneg %p81
        %p184 = pneg %p78
        %p185 = scmp.lt.s32.totalorder %s13, 1
        %s186 = scalar_select %p185, %s13, 1
        %s187 = smul.addr %s186, 12
        %s188 = smul.addr %s187, 8
        %s189 = scalar_lea.vmem %s2, %s188
        %s190 = smul.u32 2, %s13
        %p191 = scmp.lt.s32.totalorder %s13, 1
        %s192 = scalar_select %p191, %s13, 1
        %s193 = smul.addr %s192, 12
        %s194 = smul.addr %s193, 8
        %s195 = scalar_lea.vmem %s2, %s194
        %v197 = vld [vmem:[%s0] sm:$0xf]
        %v198 = vld [vmem:[%s0 + $0x4] sm:$0xf]
        %v199 = vld [vmem:[%s0 + $0x8] sm:$0xf]
        %v200 = vld [vmem:[%s0 + $0xc] sm:$0xf]
        %v201 = vld [vmem:[%s171] sm:$0xff]
        %v202 = vld [vmem:[%s171 + $0x8] sm:$0xff]
        %v203 = vld [vmem:[%s171 + $0x10] sm:$0xff]
        %v204 = vld [vmem:[%s171 + $0x18] sm:$0xff]
        %v205 = vld [vmem:[%s171 + $0x20] sm:$0x33]
        %v210 = vunpack.c.l.b16 %v197
        %v211 = vunpack.c.l.b16 %v198
        %v212 = vunpack.c.l.b16 %v199
        %v213 = vunpack.c.l.b16 %v200
        %v214 = vpack.c.b16 %v211, %v210
        %v215 = vpack.c.b16 %v213, %v212
        %v221 = vunpack.c.l.b16 %v201
        %v222 = vunpack.c.h.b16 %v201
        %v223 = vunpack.c.l.b16 %v202
        %v224 = vunpack.c.h.b16 %v202
        %v225 = vunpack.c.l.b16 %v203
        %v226 = vunpack.c.h.b16 %v203
        %v227 = vunpack.c.l.b16 %v204
        %v228 = vunpack.c.h.b16 %v204
        %v229 = vunpack.c.l.b16 %v205
        %v230 = vunpack.c.h.b16 %v205
        %v231 = vpack.c.b16 %v223, %v221
        %v232 = vpack.c.b16 %v224, %v222
        %v233 = vpack.c.b16 %v227, %v225
        %v234 = vpack.c.b16 %v228, %v226
        %v235 = vpack.c.b16 %v229, %v229
        %v236 = vpack.c.b16 %v230, %v230
        %vm241 = vcmask 293888
        %v243 = vsel %vm241, %v214, 0
        %v246 = vsel %vm241, %v215, 0
        %vm248 = vcmask 1041408
        %v250 = vsel %vm248, %v235, 0
        %v253 = vsel %vm248, %v236, 0
        %255 = vmatprep.subr.bf16.mxu0 %v232
        %256 = vmatpush1.bf16.msra.mxu0 %v231
        %257 = vmatprep.subr.bf16.mxu0 %v234
        %258 = vmatpush1.bf16.msra.mxu0 %v233
        %259 = vmatprep.subr.bf16.mxu0 %v253
        %260 = vmatpush1.bf16.msra.mxu0 %v250
        %261 = vmatprep.subr.bf16.mxu0 0
        %262 = vmatpush1.bf16.msra.mxu0 0
        %263 = vmatprep.subr.bf16.mxu0 0
        %264 = vmatpush1.bf16.msra.mxu0 0
        %265 = vmatprep.subr.bf16.mxu0 0
        %266 = vmatpush1.bf16.msra.mxu0 0
        %267 = vmatprep.subr.bf16.mxu0 0
        %268 = vmatpush1.bf16.msra.mxu0 0
        %269 = vmatprep.subr.bf16.mxu0 0
        %270 = vmatpush1.bf16.msra.mxu0 0
        %271 = vmatprep.subr.bf16.mxu0 0
        %272 = vmatpush1.bf16.msra.mxu0 0
        %273 = vmatprep.subr.bf16.mxu0 0
        %274 = vmatpush1.bf16.msra.mxu0 0
        %275 = vmatprep.subr.bf16.mxu0 0
        %276 = vmatpush1.bf16.msra.mxu0 0
        %277 = vmatprep.subr.bf16.mxu0 0
        %278 = vmatpush1.bf16.msra.mxu0 0
        %279 = vmatprep.subr.bf16.mxu0 0
        %280 = vmatpush1.bf16.msra.mxu0 0
        %281 = vmatprep.subr.bf16.mxu0 0
        %282 = vmatpush1.bf16.msra.mxu0 0
        %283 = vmatprep.subr.bf16.mxu0 0
        %284 = vmatpush1.bf16.msra.mxu0 0
        %285 = vmatprep.subr.bf16.mxu0 0
        %286 = vmatpush1.bf16.msra.mxu0 0
        %287 = vmatprep.mubr.bf16.mxu0 0
        %288 = vmatmul.mubr.bf16.gmra.mrb[0].mxu0 %v243
        %v289 = vpop.f32.mrb[0].mxu0
        %v290 = vadd.f32 0.0, %v289
        %v291 = vpop.f32.mrb[0].mxu0
        %v292 = vadd.f32 0.0, %v291
        %v293 = vpop.f32.mrb[0].mxu0
        %v294 = vadd.f32 0.0, %v293
        %v295 = vpop.f32.mrb[0].mxu0
        %v296 = vadd.f32 0.0, %v295
        %297 = vmatprep.mubr.bf16.mxu0 0
        %298 = vmatmul.mubr.bf16.gmra.mrb[0].mxu0 %v246
        %v299 = vpop.f32.mrb[0].mxu0
        %v300 = vadd.f32 0.0, %v299
        %v301 = vpop.f32.mrb[0].mxu0
        %v302 = vadd.f32 0.0, %v301
        %v303 = vpop.f32.mrb[0].mxu0
        %v304 = vadd.f32 0.0, %v303
        %v305 = vpop.f32.mrb[0].mxu0
        %v306 = vadd.f32 0.0, %v305
        %307 = vdwg.mxu0
        %v308 = vadd.f32 %v290, %v292
        %309 = vadd.xlane.f32.xlu0 %v308
        %v310 = vpop.xlane.xlu0 %309
        %v311 = vadd.f32 %v294, %v296
        %312 = vadd.xlane.f32.xlu0 %v311
        %v313 = vpop.xlane.xlu0 %312
        %v314 = vadd.f32 %v300, %v302
        %315 = vadd.xlane.f32.xlu0 %v314
        %v316 = vpop.xlane.xlu0 %315
        %v317 = vadd.f32 %v304, %v306
        %318 = vadd.xlane.f32.xlu0 %v317
        %v319 = vpop.xlane.xlu0 %318
        %v320 = vmul.f32 %v310, 0.00390625
        %v321 = vmul.f32 %v313, 0.00390625
        %v322 = vmul.f32 %v316, 0.00390625
        %v323 = vmul.f32 %v319, 0.00390625
        %v324 = vsub.f32 %v290, %v320
        %v325 = vsub.f32 %v292, %v320
        %v326 = vsub.f32 %v294, %v321
        %v327 = vsub.f32 %v296, %v321
        %v328 = vsub.f32 %v300, %v322
        %v329 = vsub.f32 %v302, %v322
        %v330 = vsub.f32 %v304, %v323
        %v331 = vsub.f32 %v306, %v323
        %v332 = vmul.f32 %v324, %v324
        %v333 = vmul.f32 %v325, %v325
        %v334 = vmul.f32 %v326, %v326
        %v335 = vmul.f32 %v327, %v327
        %v336 = vmul.f32 %v328, %v328
        %v337 = vmul.f32 %v329, %v329
        %v338 = vmul.f32 %v330, %v330
        %v339 = vmul.f32 %v331, %v331
        %v340 = vadd.f32 %v332, %v333
        %341 = vadd.xlane.f32.xlu0 %v340
        %v342 = vpop.xlane.xlu0 %341
        %v343 = vadd.f32 %v334, %v335
        %344 = vadd.xlane.f32.xlu0 %v343
        %v345 = vpop.xlane.xlu0 %344
        %v346 = vadd.f32 %v336, %v337
        %347 = vadd.xlane.f32.xlu0 %v346
        %v348 = vpop.xlane.xlu0 %347
        %v349 = vadd.f32 %v338, %v339
        %350 = vadd.xlane.f32.xlu0 %v349
        %v351 = vpop.xlane.xlu0 %350
        %vm352 = vcmask 7168
        %353 = vst.msk [vmem:[%s195] sm:$0xff] %vm352, %v310
        %354 = vst.msk [vmem:[%s195 + $0x8] sm:$0xff] %vm352, %v313
        %355 = vst.msk [vmem:[%s195 + $0x10] sm:$0xff] %vm352, %v316
        %356 = vst.msk [vmem:[%s195 + $0x18] sm:$0xff] %vm352, %v319
        %s357 = scalar_lea.vmem %s195, 32
        %358 = vst.msk [vmem:[%s357] sm:$0xff] %vm352, %v342
        %359 = vst.msk [vmem:[%s357 + $0x8] sm:$0xff] %vm352, %v345
        %360 = vst.msk [vmem:[%s357 + $0x10] sm:$0xff] %vm352, %v348
        %361 = vst.msk [vmem:[%s357 + $0x18] sm:$0xff] %vm352, %v351
        %s362 = scalar_lea.vmem %s195, 64
        %363 = vst.msk [vmem:[%s362] sm:$0xff] %vm352, %v320
        %364 = vst.msk [vmem:[%s362 + $0x8] sm:$0xff] %vm352, %v321
        %365 = vst.msk [vmem:[%s362 + $0x10] sm:$0xff] %vm352, %v322
        %366 = vst.msk [vmem:[%s362 + $0x18] sm:$0xff] %vm352, %v323
        %p367 = scmp.lt.s32.totalorder %s13, 1
        %s368 = scalar_select %p367, %s13, 1
        %s369 = smul.addr %s368, 12
        %s370 = smul.addr %s369, 8
        %s371 = scalar_lea.vmem %s2, %s370
        // Predicated region
        $region67: #{decoder_forward.2} parent=61 // pred_check
          %p372 = pneg %p78
        $region68: #{decoder_forward.2} parent=61 // pred_check_branch
          %374 = sbr.rel (%p372) target = $region70
        $region69: #{decoder_forward.2} parent=61 // pred_region
          _
        $region70: #{decoder_forward.2} parent=61 // pred_fallthru
          _
      $region62: #{decoder_forward.2} parent=5 // pred_fallthru
        _
      %p375 = scmp.le.s32.totalorder 2, %s8
      // Predicated region
      $region71: #{decoder_forward.2} parent=5 // pred_check
        %p376 = pneg %p375
      $region72: #{decoder_forward.2} parent=5 // pred_check_branch
        %378 = sbr.rel (%p376) target = $region74
      $region73: #{decoder_forward.2} parent=5 // pred_region
        %s379 = ssub.s32 %s8, 2
        // Predicated region
        $region75: #{decoder_forward.2} parent=73 // pred_check
          %p380 = pneg %p84
        $region76: #{decoder_forward.2} parent=73 // pred_check_branch
          %382 = sbr.rel (%p380) target = $region78
        $region77: #{decoder_forward.2} parent=73 // pred_region
          %p383 = scmp.lt.s32.totalorder %s14, 1
          %s384 = scalar_select %p383, %s14, 1
          %s385 = smul.addr %s384, 12
          %s386 = smul.addr %s385, 8
          %s387 = scalar_lea.vmem %s2, %s386
        $region78: #{decoder_forward.2} parent=73 // pred_fallthru
          _
      $region74: #{decoder_forward.2} parent=5 // pred_fallthru
        _
    $region6: #{decoder_forward.2} parent=1 // loop_footer
      %s12 = sadd.s32 1, %s8
    $region7: #{decoder_forward.2} parent=1 // loop_footer_branch
      %7 = sbr.rel target = $region3
    $region8: #{decoder_forward.2} parent=1 // loop_exit
      _

// kernel: decoder_forward.3
$region0: #{decoder_forward.3}
  #allocation0 [shape = 'u32[]', space=smem, size = 0x4, offset = 0x4, fixed_abs, tag = 'smem constant byte address 0x4 - core index']
  #allocation1 [shape = 'u32[144,128]{1,0:T(1,128)}', space=vmem, size = 0x12000, scoped, tag = 'internal scratch']
  %s0 = inlined_call_operand.vmem [shape: bf16[32,36], index: 0, kind: input, shape index: {}]
  %s1 = inlined_call_operand.vmem [shape: bf16[36,512], index: 1, kind: input, shape index: {}]
  %s2 = inlined_call_operand.vmem [shape: f32[2,32,1], index: 2, kind: input, shape index: {}]
  %s3 = inlined_call_operand.vmem [shape: f32[32,512], index: 3, kind: output, shape index: {}]
  %s4 = sld [smem:[#allocation0]]
  $region102: #{decoder_forward.3} parent=0
    _
  %s6 = ssub.s32 1, %s4
  %s7 = scalar_select 0, %s6, %s4
  $region1: #{decoder_forward.3} parent=0
    #allocation2 [shape = 'u8[40960]{0}', space=vmem, size = 0xa000, scoped, tag = 'input window, operand 1']
    #allocation3 [shape = 'u8[65536]{0}', space=vmem, size = 0x10000, scoped, tag = 'output window, operand 0']
    loop: start=0, step=1, limit=4
    $region2: #{decoder_forward.3} parent=1 // loop_pre_header
      _
    $region3: #{decoder_forward.3} parent=1 // loop_header
      %s9 = sphi 0, %s13
      %p10 = scmp.ge.s32.totalorder %s9, 4
      %s17 = sphi 0, %s17
      %s19 = sphi 0, %s17
      %s20 = sphi 0, %s19
      %s34 = sphi 0, %s20
      %s40 = sphi 0, %s42
      %s43 = sphi 0, %s40
      %s44 = sphi 0, %s43
      %s60 = sphi 0, %s44
      %s64 = sphi 0, %s64
      %s66 = sphi 0, %s64
      %s67 = sphi 0, %s66
      %s81 = sphi 0, %s67
      %s87 = sphi 0, %s89
      %s90 = sphi 0, %s87
      %s91 = sphi 0, %s90
      %s107 = sphi 0, %s91
    $region4: #{decoder_forward.3} parent=1 // loop_header_branch
      %12 = sbr.rel (%p10) target = $region8
    $region5: #{decoder_forward.3} parent=1 // loop_body
      %s14 = ssub.s32 %s9, 1
      %s15 = ssub.s32 %s9, 2
      %s16 = sadd.s32 %s9, 1
      %s18 = sadd.s32 %s17, 1
      %p21 = scmp.eq.s32.totalorder %s9, 1
      %p22 = scmp.ne.s32.totalorder %s17, %s19
      %p23 = scmp.eq.s32.totalorder %s9, 0
      %p24 = por %p22, %p23
      %p25 = scmp.ne.s32.totalorder %s17, %s19
      %p26 = scmp.eq.s32.totalorder %s14, 1
      %p27 = por %p25, %p26
      %p28 = scmp.ne.s32.totalorder %s19, %s20
      %p29 = scmp.eq.s32.totalorder %s14, 0
      %p30 = por %p28, %p29
      %p31 = scmp.ne.s32.totalorder %s19, %s20
      %p32 = scmp.eq.s32.totalorder %s15, 1
      %p33 = por %p31, %p32
      %p35 = scmp.ne.s32.totalorder %s20, %s34
      %p36 = scmp.eq.s32.totalorder %s15, 0
      %p37 = por %p35, %p36
      %s38 = ssub.s32 %s9, %s16
      %p39 = scmp.eq.s32.totalorder %s38, 0
      %s41 = sadd.s32 %s40, 1
      %s42 = scalar_select %p39, %s40, %s41
      %p45 = pneg %p39
      %p46 = scmp.eq.s32.totalorder %s9, 1
      %p47 = por %p45, %p46
      %p48 = scmp.ne.s32.totalorder %s40, %s43
      %p49 = scmp.eq.s32.totalorder %s9, 0
      %p50 = por %p48, %p49
      %p51 = scmp.ne.s32.totalorder %s40, %s43
      %p52 = scmp.eq.s32.totalorder %s14, 1
      %p53 = por %p51, %p52
      %p54 = scmp.ne.s32.totalorder %s43, %s44
      %p55 = scmp.eq.s32.totalorder %s14, 0
      %p56 = por %p54, %p55
      %p57 = scmp.ne.s32.totalorder %s43, %s44
      %p58 = scmp.eq.s32.totalorder %s15, 1
      %p59 = por %p57, %p58
      %p61 = scmp.ne.s32.totalorder %s44, %s60
      %p62 = scmp.eq.s32.totalorder %s15, 0
      %p63 = por %p61, %p62
      %s65 = sadd.s32 %s64, 1
      %p68 = scmp.eq.s32.totalorder %s9, 1
      %p69 = scmp.ne.s32.totalorder %s64, %s66
      %p70 = scmp.eq.s32.totalorder %s9, 0
      %p71 = por %p69, %p70
      %p72 = scmp.ne.s32.totalorder %s64, %s66
      %p73 = scmp.eq.s32.totalorder %s14, 1
      %p74 = por %p72, %p73
      %p75 = scmp.ne.s32.totalorder %s66, %s67
      %p76 = scmp.eq.s32.totalorder %s14, 0
      %p77 = por %p75, %p76
      %p78 = scmp.ne.s32.totalorder %s66, %s67
      %p79 = scmp.eq.s32.totalorder %s15, 1
      %p80 = por %p78, %p79
      %p82 = scmp.ne.s32.totalorder %s67, %s81
      %p83 = scmp.eq.s32.totalorder %s15, 0
      %p84 = por %p82, %p83
      %s85 = ssub.s32 %s9, %s16
      %p86 = scmp.eq.s32.totalorder %s85, 0
      %s88 = sadd.s32 %s87, 1
      %s89 = scalar_select %p86, %s87, %s88
      %p92 = pneg %p86
      %p93 = scmp.eq.s32.totalorder %s9, 1
      %p94 = por %p92, %p93
      %p95 = scmp.ne.s32.totalorder %s87, %s90
      %p96 = scmp.eq.s32.totalorder %s9, 0
      %p97 = por %p95, %p96
      %p98 = scmp.ne.s32.totalorder %s87, %s90
      %p99 = scmp.eq.s32.totalorder %s14, 1
      %p100 = por %p98, %p99
      %p101 = scmp.ne.s32.totalorder %s90, %s91
      %p102 = scmp.eq.s32.totalorder %s14, 0
      %p103 = por %p101, %p102
      %p104 = scmp.ne.s32.totalorder %s90, %s91
      %p105 = scmp.eq.s32.totalorder %s15, 1
      %p106 = por %p104, %p105
      %p108 = scmp.ne.s32.totalorder %s91, %s107
      %p109 = scmp.eq.s32.totalorder %s15, 0
      %p110 = por %p108, %p109
      %p111 = scmp.le.s32.totalorder 1, %s9
      %p112 = scmp.lt.s32.totalorder %s9, 3
      %p113 = pnand %p111, %p112
      %p114 = pneg %p113
      // Predicated region
      $region9: #{decoder_forward.3} parent=5 // pred_check
        _
      $region10: #{decoder_forward.3} parent=5 // pred_check_branch
        %116 = sbr.rel (%p113) target = $region12
      $region11: #{decoder_forward.3} parent=5 // pred_region
        %s117 = ssub.s32 %s9, 1
        // Predicated region
        $region13: #{decoder_forward.3} parent=11 // pred_check
          %p118 = pneg %p30
        $region14: #{decoder_forward.3} parent=11 // pred_check_branch
          %120 = sbr.rel (%p118) target = $region16
        $region15: #{decoder_forward.3} parent=11 // pred_region
          _
        $region16: #{decoder_forward.3} parent=11 // pred_fallthru
          _
        // Predicated region
        $region17: #{decoder_forward.3} parent=11 // pred_check
          %p121 = pneg %p77
        $region18: #{decoder_forward.3} parent=11 // pred_check_branch
          %123 = sbr.rel (%p121) target = $region20
        $region19: #{decoder_forward.3} parent=11 // pred_region
          _
        $region20: #{decoder_forward.3} parent=11 // pred_fallthru
          _
      $region12: #{decoder_forward.3} parent=5 // pred_fallthru
        _
      %p124 = scmp.lt.s32.totalorder %s9, 2
      // Predicated region
      $region21: #{decoder_forward.3} parent=5 // pred_check
        %p125 = pneg %p124
      $region22: #{decoder_forward.3} parent=5 // pred_check_branch
        %127 = sbr.rel (%p125) target = $region24
      $region23: #{decoder_forward.3} parent=5 // pred_region
        // Predicated region
        $region25: #{decoder_forward.3} parent=23 // pred_check
          %p128 = pneg %p50
        $region26: #{decoder_forward.3} parent=23 // pred_check_branch
          %130 = sbr.rel (%p128) target = $region28
        $region27: #{decoder_forward.3} parent=23 // pred_region
          %s131 = sand.u32 %s40, 1
          %s132 = sand.u32 %s40, 1
          %s133 = smul.addr %s132, 40
          %s134 = scalar_lea.vmem [#allocation2], %s133
          %s135 = smul.u32 2, %s9
          %s136 = smul.addr %s135, 4
          %s137 = scalar_lea.vmem %s1, %s136
          // Predicated region
          $region29: #{decoder_forward.3} parent=27 // pred_check
            _
          $region30: #{decoder_forward.3} parent=27 // pred_check_branch
            %139 = sbr.rel (0) target = $region32
          $region31: #{decoder_forward.3} parent=27 // pred_region
            // Predicated region
            $region33: #{decoder_forward.3} parent=31 // pred_check
              _
            $region34: #{decoder_forward.3} parent=31 // pred_check_branch
              %141 = sbr.rel (0) target = $region36
            $region35: #{decoder_forward.3} parent=31 // pred_region
              // Predicated region
              $region48: #{decoder_forward.3} parent=35 // pred_check
                _
              $region49: #{decoder_forward.3} parent=35 // pred_check_branch
                %164 = sbr.rel (0) target = $region51
              $region50: #{decoder_forward.3} parent=35 // pred_region
                loop: start=0, step=1, limit=1
                $region52: #{decoder_forward.3} parent=50 // loop_pre_header
                  _
                $region53: #{decoder_forward.3} parent=50 // loop_header
                  %s166 = sphi 0, %s170
                  %p167 = scmp.ge.s32.totalorder %s166, 1
                  %s171 = sphi %s137, %s137
                  %s172 = sphi %s134, %s134
                $region54: #{decoder_forward.3} parent=50 // loop_header_branch
                  %169 = sbr.rel (%p167) target = $region58
                $region55: #{decoder_forward.3} parent=50 // loop_body
                  %v173 = vld [vmem:[%s171] sm:$0xff]
                  %174 = vst [vmem:[%s172] sm:$0xff] %v173
                  %v175 = vld [vmem:[%s171 + $0x10] sm:$0xff]
                  %176 = vst [vmem:[%s172 + $0x8] sm:$0xff] %v175
                  %v177 = vld [vmem:[%s171 + $0x20] sm:$0xff]
                  %178 = vst [vmem:[%s172 + $0x10] sm:$0xff] %v177
                  %v179 = vld [vmem:[%s171 + $0x30] sm:$0xff]
                  %180 = vst [vmem:[%s172 + $0x18] sm:$0xff] %v179
                  %v181 = vld [vmem:[%s171 + $0x40] sm:$0xff]
                  %182 = vst [vmem:[%s172 + $0x20] sm:$0xff] %v181
                $region56: #{decoder_forward.3} parent=50 // loop_footer
                  %s170 = sadd.s32 1, %s166
                $region57: #{decoder_forward.3} parent=50 // loop_footer_branch
                  %165 = sbr.rel target = $region53
                $region58: #{decoder_forward.3} parent=50 // loop_exit
                  _
              $region51: #{decoder_forward.3} parent=35 // pred_fallthru
                _
              // Predicated region
              $region59: #{decoder_forward.3} parent=35 // pred_check
                _
              $region60: #{decoder_forward.3} parent=35 // pred_check_branch
                %184 = sbr.rel target = $region62
              $region61: #{decoder_forward.3} parent=35 // pred_region
                _
              $region62: #{decoder_forward.3} parent=35 // pred_fallthru
                _
            $region36: #{decoder_forward.3} parent=31 // pred_fallthru
              _
            // Predicated region
            $region37: #{decoder_forward.3} parent=31 // pred_check
              _
            $region38: #{decoder_forward.3} parent=31 // pred_check_branch
              %143 = sbr.rel target = $region40
            $region39: #{decoder_forward.3} parent=31 // pred_region
              loop: start=0, step=1, limit=1
              $region41: #{decoder_forward.3} parent=39 // loop_pre_header
                _
              $region42: #{decoder_forward.3} parent=39 // loop_header
                %s146 = sphi 0, %s150
                %p147 = scmp.ge.s32.totalorder %s146, 1
                %s151 = sphi %s137, %s137
                %s152 = sphi %s134, %s134
              $region43: #{decoder_forward.3} parent=39 // loop_header_branch
                %149 = sbr.rel (%p147) target = $region47
              $region44: #{decoder_forward.3} parent=39 // loop_body
                %v153 = vld [vmem:[%s151] sm:$0xff]
                %154 = vst [vmem:[%s152] sm:$0xff] %v153
                %v155 = vld [vmem:[%s151 + $0x10] sm:$0xff]
                %156 = vst [vmem:[%s152 + $0x8] sm:$0xff] %v155
                %v157 = vld [vmem:[%s151 + $0x20] sm:$0xff]
                %158 = vst [vmem:[%s152 + $0x10] sm:$0xff] %v157
                %v159 = vld [vmem:[%s151 + $0x30] sm:$0xff]
                %160 = vst [vmem:[%s152 + $0x18] sm:$0xff] %v159
                %v161 = vld [vmem:[%s151 + $0x40] sm:$0xff]
                %162 = vst [vmem:[%s152 + $0x20] sm:$0xff] %v161
              $region45: #{decoder_forward.3} parent=39 // loop_footer
                %s150 = sadd.s32 1, %s146
              $region46: #{decoder_forward.3} parent=39 // loop_footer_branch
                %145 = sbr.rel target = $region42
              $region47: #{decoder_forward.3} parent=39 // loop_exit
                _
            $region40: #{decoder_forward.3} parent=31 // pred_fallthru
              _
          $region32: #{decoder_forward.3} parent=27 // pred_fallthru
            _
          %185 = vnop
        $region28: #{decoder_forward.3} parent=23 // pred_fallthru
          _
      $region24: #{decoder_forward.3} parent=5 // pred_fallthru
        _
      %p186 = scmp.le.s32.totalorder 1, %s9
      %p187 = scmp.lt.s32.totalorder %s9, 3
      %p188 = pnand %p186, %p187
      %p189 = pneg %p188
      // Predicated region
      $region63: #{decoder_forward.3} parent=5 // pred_check
        _
      $region64: #{decoder_forward.3} parent=5 // pred_check_branch
        %191 = sbr.rel (%p188) target = $region66
      $region65: #{decoder_forward.3} parent=5 // pred_region
        %s192 = ssub.s32 %s9, 1
        %s193 = sand.u32 %s43, 1
        %s194 = sand.u32 %s43, 1
        %s195 = smul.addr %s194, 40
        %s196 = scalar_lea.vmem [#allocation2], %s195
        // Predicated region
        $region67: #{decoder_forward.3} parent=65 // pred_check
          %p197 = pneg %p56
        $region68: #{decoder_forward.3} parent=65 // pred_check_branch
          %199 = sbr.rel (%p197) target = $region70
        $region69: #{decoder_forward.3} parent=65 // pred_region
          _
        $region70: #{decoder_forward.3} parent=65 // pred_fallthru
          _
        %p200 = pneg %p30
        %p201 = pneg %p27
        %s202 = sand.u32 %s43, 1
        %s203 = sand.u32 %s43, 1
        %s204 = smul.addr %s203, 40
        %s205 = scalar_lea.vmem [#allocation2], %s204
        %p206 = pneg %p56
        %p207 = pneg %p53
        %p208 = pneg %p77
        %p209 = pneg %p74
        %p210 = pneg %p103
        %p211 = pneg %p100
        %s212 = sand.u32 %s90, 1
        %s213 = sand.u32 %s90, 1
        %s214 = smul.addr %s213, 64
        %s215 = scalar_lea.vmem [#allocation3], %s214
        %s216 = smul.u32 2, %s14
        %s217 = smul.u32 2, %s14
        %v219 = vld [vmem:[%s0] sm:$0xf]
        %v220 = vld [vmem:[%s0 + $0x4] sm:$0xf]
        %v221 = vld [vmem:[%s0 + $0x8] sm:$0xf]
        %v222 = vld [vmem:[%s0 + $0xc] sm:$0xf]
        %v223 = vld [vmem:[%s196] sm:$0xff]
        %v224 = vld [vmem:[%s196 + $0x8] sm:$0xff]
        %v225 = vld [vmem:[%s196 + $0x10] sm:$0xff]
        %v226 = vld [vmem:[%s196 + $0x18] sm:$0xff]
        %v227 = vld [vmem:[%s196 + $0x20] sm:$0x33]
        %v232 = vunpack.c.l.b16 %v219
        %v233 = vunpack.c.l.b16 %v220
        %v234 = vunpack.c.l.b16 %v221
        %v235 = vunpack.c.l.b16 %v222
        %v236 = vpack.c.b16 %v233, %v232
        %v237 = vpack.c.b16 %v235, %v234
        %v243 = vunpack.c.l.b16 %v223
        %v244 = vunpack.c.h.b16 %v223
        %v245 = vunpack.c.l.b16 %v224
        %v246 = vunpack.c.h.b16 %v224
        %v247 = vunpack.c.l.b16 %v225
        %v248 = vunpack.c.h.b16 %v225
        %v249 = vunpack.c.l.b16 %v226
        %v250 = vunpack.c.h.b16 %v226
        %v251 = vunpack.c.l.b16 %v227
        %v252 = vunpack.c.h.b16 %v227
        %v253 = vpack.c.b16 %v245, %v243
        %v254 = vpack.c.b16 %v246, %v244
        %v255 = vpack.c.b16 %v249, %v247
        %v256 = vpack.c.b16 %v250, %v248
        %v257 = vpack.c.b16 %v251, %v251
        %v258 = vpack.c.b16 %v252, %v252
        %vm263 = vcmask 293888
        %v265 = vsel %vm263, %v236, 0
        %v268 = vsel %vm263, %v237, 0
        %vm270 = vcmask 1041408
        %v272 = vsel %vm270, %v257, 0
        %v275 = vsel %vm270, %v258, 0
        %277 = vmatprep.subr.bf16.mxu0 %v254
        %278 = vmatpush1.bf16.msra.mxu0 %v253
        %279 = vmatprep.subr.bf16.mxu0 %v256
        %280 = vmatpush1.bf16.msra.mxu0 %v255
        %281 = vmatprep.subr.bf16.mxu0 %v275
        %282 = vmatpush1.bf16.msra.mxu0 %v272
        %283 = vmatprep.subr.bf16.mxu0 0
        %284 = vmatpush1.bf16.msra.mxu0 0
        %285 = vmatprep.subr.bf16.mxu0 0
        %286 = vmatpush1.bf16.msra.mxu0 0
        %287 = vmatprep.subr.bf16.mxu0 0
        %288 = vmatpush1.bf16.msra.mxu0 0
        %289 = vmatprep.subr.bf16.mxu0 0
        %290 = vmatpush1.bf16.msra.mxu0 0
        %291 = vmatprep.subr.bf16.mxu0 0
        %292 = vmatpush1.bf16.msra.mxu0 0
        %293 = vmatprep.subr.bf16.mxu0 0
        %294 = vmatpush1.bf16.msra.mxu0 0
        %295 = vmatprep.subr.bf16.mxu0 0
        %296 = vmatpush1.bf16.msra.mxu0 0
        %297 = vmatprep.subr.bf16.mxu0 0
        %298 = vmatpush1.bf16.msra.mxu0 0
        %299 = vmatprep.subr.bf16.mxu0 0
        %300 = vmatpush1.bf16.msra.mxu0 0
        %301 = vmatprep.subr.bf16.mxu0 0
        %302 = vmatpush1.bf16.msra.mxu0 0
        %303 = vmatprep.subr.bf16.mxu0 0
        %304 = vmatpush1.bf16.msra.mxu0 0
        %305 = vmatprep.subr.bf16.mxu0 0
        %306 = vmatpush1.bf16.msra.mxu0 0
        %307 = vmatprep.subr.bf16.mxu0 0
        %308 = vmatpush1.bf16.msra.mxu0 0
        %309 = vmatprep.mubr.bf16.mxu0 0
        %310 = vmatmul.mubr.bf16.gmra.mrb[0].mxu0 %v265
        %v311 = vpop.f32.mrb[0].mxu0
        %v312 = vadd.f32 0.0, %v311
        %v313 = vpop.f32.mrb[0].mxu0
        %v314 = vadd.f32 0.0, %v313
        %v315 = vpop.f32.mrb[0].mxu0
        %v316 = vadd.f32 0.0, %v315
        %v317 = vpop.f32.mrb[0].mxu0
        %v318 = vadd.f32 0.0, %v317
        %319 = vmatprep.mubr.bf16.mxu0 0
        %320 = vmatmul.mubr.bf16.gmra.mrb[0].mxu0 %v268
        %v321 = vpop.f32.mrb[0].mxu0
        %v322 = vadd.f32 0.0, %v321
        %v323 = vpop.f32.mrb[0].mxu0
        %v324 = vadd.f32 0.0, %v323
        %v325 = vpop.f32.mrb[0].mxu0
        %v326 = vadd.f32 0.0, %v325
        %v327 = vpop.f32.mrb[0].mxu0
        %v328 = vadd.f32 0.0, %v327
        %329 = vdwg.mxu0
        %v330 = vld [vmem:[%s2] sm:$0xff]
        %v331 = vld [vmem:[%s2 + $0x8] sm:$0xff]
        %v332 = vld [vmem:[%s2 + $0x10] sm:$0xff]
        %v333 = vld [vmem:[%s2 + $0x18] sm:$0xff]
        %335 = vset.pattern.permute.xlu0 0
        %336 = vperm.xlu0 %335, %v330
        %v337 = vpop.permute.xlu0 %336
        %340 = vset.pattern.permute.xlu0 0
        %341 = vperm.xlu0 %340, %v331
        %v342 = vpop.permute.xlu0 %341
        %345 = vset.pattern.permute.xlu0 0
        %346 = vperm.xlu0 %345, %v332
        %v347 = vpop.permute.xlu0 %346
        %350 = vset.pattern.permute.xlu0 0
        %351 = vperm.xlu0 %350, %v333
        %v352 = vpop.permute.xlu0 %351
        %v354 = vmul.f32 %v312, %v337
        %v355 = vmul.f32 %v314, %v337
        %v356 = vmul.f32 %v316, %v342
        %v357 = vmul.f32 %v318, %v342
        %v358 = vmul.f32 %v322, %v347
        %v359 = vmul.f32 %v324, %v347
        %v360 = vmul.f32 %v326, %v352
        %v361 = vmul.f32 %v328, %v352
        %s362 = scalar_lea.vmem %s2, 32
        %v363 = vld [vmem:[%s362] sm:$0xff]
        %v364 = vld [vmem:[%s362 + $0x8] sm:$0xff]
        %v365 = vld [vmem:[%s362 + $0x10] sm:$0xff]
        %v366 = vld [vmem:[%s362 + $0x18] sm:$0xff]
        %368 = vset.pattern.permute.xlu0 0
        %369 = vperm.xlu0 %368, %v363
        %v370 = vpop.permute.xlu0 %369
        %373 = vset.pattern.permute.xlu0 0
        %374 = vperm.xlu0 %373, %v364
        %v375 = vpop.permute.xlu0 %374
        %378 = vset.pattern.permute.xlu0 0
        %379 = vperm.xlu0 %378, %v365
        %v380 = vpop.permute.xlu0 %379
        %383 = vset.pattern.permute.xlu0 0
        %384 = vperm.xlu0 %383, %v366
        %v385 = vpop.permute.xlu0 %384
        %v387 = vadd.f32 %v354, %v370
        %v388 = vadd.f32 %v355, %v370
        %v389 = vadd.f32 %v356, %v375
        %v390 = vadd.f32 %v357, %v375
        %v391 = vadd.f32 %v358, %v380
        %v392 = vadd.f32 %v359, %v380
        %v393 = vadd.f32 %v360, %v385
        %v394 = vadd.f32 %v361, %v385
        %v395 = vmax.f32 %v387, 0.0
        %v396 = vmax.f32 %v388, 0.0
        %v397 = vmax.f32 %v389, 0.0
        %v398 = vmax.f32 %v390, 0.0
        %v399 = vmax.f32 %v391, 0.0
        %v400 = vmax.f32 %v392, 0.0
        %v401 = vmax.f32 %v393, 0.0
        %v402 = vmax.f32 %v394, 0.0
        %403 = vst [vmem:[%s215] sm:$0xff] %v395
        %404 = vst [vmem:[%s215 + $0x8] sm:$0xff] %v396
        %405 = vst [vmem:[%s215 + $0x10] sm:$0xff] %v397
        %406 = vst [vmem:[%s215 + $0x18] sm:$0xff] %v398
        %407 = vst [vmem:[%s215 + $0x20] sm:$0xff] %v399
        %408 = vst [vmem:[%s215 + $0x28] sm:$0xff] %v400
        %409 = vst [vmem:[%s215 + $0x30] sm:$0xff] %v401
        %410 = vst [vmem:[%s215 + $0x38] sm:$0xff] %v402
        %s411 = sand.u32 %s90, 1
        %s412 = sand.u32 %s90, 1
        %s413 = smul.addr %s412, 64
        %s414 = scalar_lea.vmem [#allocation3], %s413
        // Predicated region
        $region71: #{decoder_forward.3} parent=65 // pred_check
          %p415 = pneg %p100
        $region72: #{decoder_forward.3} parent=65 // pred_check_branch
          %417 = sbr.rel (%p415) target = $region74
        $region73: #{decoder_forward.3} parent=65 // pred_region
          %s418 = smul.u32 2, %s14
          %s419 = smul.addr %s418, 8
          %s420 = scalar_lea.vmem %s3, %s419
          // Predicated region
          $region75: #{decoder_forward.3} parent=73 // pred_check
            _
          $region76: #{decoder_forward.3} parent=73 // pred_check_branch
            %422 = sbr.rel (0) target = $region78
          $region77: #{decoder_forward.3} parent=73 // pred_region
            // Predicated region
            $region79: #{decoder_forward.3} parent=77 // pred_check
              _
            $region80: #{decoder_forward.3} parent=77 // pred_check_branch
              %424 = sbr.rel (0) target = $region82
            $region81: #{decoder_forward.3} parent=77 // pred_region
              loop: start=0, step=1, limit=1
              $region83: #{decoder_forward.3} parent=81 // loop_pre_header
                _
              $region84: #{decoder_forward.3} parent=81 // loop_header
                %s426 = sphi 0, %s430
                %p427 = scmp.ge.s32.totalorder %s426, 1
                %s431 = sphi %s414, %s414
                %s432 = sphi %s420, %s420
              $region85: #{decoder_forward.3} parent=81 // loop_header_branch
                %429 = sbr.rel (%p427) target = $region89
              $region86: #{decoder_forward.3} parent=81 // loop_body
                %v433 = vld [vmem:[%s431] sm:$0xff]
                %434 = vst [vmem:[%s432] sm:$0xff] %v433
                %v435 = vld [vmem:[%s431 + $0x8] sm:$0xff]
                %436 = vst [vmem:[%s432 + $0x8] sm:$0xff] %v435
                %v437 = vld [vmem:[%s431 + $0x10] sm:$0xff]
                %438 = vst [vmem:[%s432 + $0x20] sm:$0xff] %v437
                %v439 = vld [vmem:[%s431 + $0x18] sm:$0xff]
                %440 = vst [vmem:[%s432 + $0x28] sm:$0xff] %v439
                %v441 = vld [vmem:[%s431 + $0x20] sm:$0xff]
                %442 = vst [vmem:[%s432 + $0x40] sm:$0xff] %v441
                %v443 = vld [vmem:[%s431 + $0x28] sm:$0xff]
                %444 = vst [vmem:[%s432 + $0x48] sm:$0xff] %v443
                %v445 = vld [vmem:[%s431 + $0x30] sm:$0xff]
                %446 = vst [vmem:[%s432 + $0x60] sm:$0xff] %v445
                %v447 = vld [vmem:[%s431 + $0x38] sm:$0xff]
                %448 = vst [vmem:[%s432 + $0x68] sm:$0xff] %v447
              $region87: #{decoder_forward.3} parent=81 // loop_footer
                %s430 = sadd.s32 1, %s426
              $region88: #{decoder_forward.3} parent=81 // loop_footer_branch
                %425 = sbr.rel target = $region84
              $region89: #{decoder_forward.3} parent=81 // loop_exit
                _
            $region82: #{decoder_forward.3} parent=77 // pred_fallthru
              _
            // Predicated region
            $region90: #{decoder_forward.3} parent=77 // pred_check
              _
            $region91: #{decoder_forward.3} parent=77 // pred_check_branch
              %450 = sbr.rel target = $region93
            $region92: #{decoder_forward.3} parent=77 // pred_region
              _
            $region93: #{decoder_forward.3} parent=77 // pred_fallthru
              _
          $region78: #{decoder_forward.3} parent=73 // pred_fallthru
            _
          %451 = vnop
        $region74: #{decoder_forward.3} parent=65 // pred_fallthru
          _
      $region66: #{decoder_forward.3} parent=5 // pred_fallthru
        _
      %p452 = scmp.le.s32.totalorder 2, %s9
      // Predicated region
      $region94: #{decoder_forward.3} parent=5 // pred_check
        %p453 = pneg %p452
      $region95: #{decoder_forward.3} parent=5 // pred_check_branch
        %455 = sbr.rel (%p453) target = $region97
      $region96: #{decoder_forward.3} parent=5 // pred_region
        %s456 = ssub.s32 %s9, 2
        // Predicated region
        $region98: #{decoder_forward.3} parent=96 // pred_check
          %p457 = pneg %p106
        $region99: #{decoder_forward.3} parent=96 // pred_check_branch
          %459 = sbr.rel (%p457) target = $region101
        $region100: #{decoder_forward.3} parent=96 // pred_region
          %s460 = sand.u32 %s91, 1
          %s461 = sand.u32 %s91, 1
          %s462 = smul.addr %s461, 64
          %s463 = scalar_lea.vmem [#allocation3], %s462
        $region101: #{decoder_forward.3} parent=96 // pred_fallthru
          _
      $region97: #{decoder_forward.3} parent=5 // pred_fallthru
        _
    $region6: #{decoder_forward.3} parent=1 // loop_footer
      %s13 = sadd.s32 1, %s9
    $region7: #{decoder_forward.3} parent=1 // loop_footer_branch
      %8 = sbr.rel target = $region3
    $region8: #{decoder_forward.3} parent=1 // loop_exit
      _

</llo_original>
